<compile_context>
chip_gen: v5e
topology: v5e:2x2
jax: 0.10.0
libtpu: 0.0.40
codegen_flags: <defaults>
</compile_context>

<pallas_src>
import functools

import jax
import jax.numpy as jnp
from jax.experimental import pallas as pl
from jax.experimental.pallas import tpu as pltpu


_RESIDENT_WEIGHT_BUDGET = 40 << 20   # bytes; v7x-safe (64 MiB physical VMEM)


def _round_up(x: int, m: int) -> int:
    return (x + m - 1) // m * m


def _pick_divisor_tile(dim_pad: int, max_tile: int) -> int:
    """Largest multiple-of-128 tile <= max_tile that divides dim_pad."""
    t = max(128, (min(dim_pad, max_tile) // 128) * 128)
    while dim_pad % t != 0:
        t -= 128
    return t


def _choose_batch_tiling(B: int):
    """Batch tile (multiple of 16 for bf16 packing, <=256) and padded batch.
    Aims for >=2 grid steps when batch permits so v7x's 2 TCs both get work."""
    b16 = _round_up(max(B, 1), 16)
    if b16 <= 16:
        return b16, b16
    tm = min(256, _round_up(pl.cdiv(b16, 2), 16))
    b_pad = _round_up(b16, tm)
    return tm, b_pad


# ----------------------------------------------------------------------------
# Fused resident-weight kernel: whole MLP in one grid step per batch tile.
# ----------------------------------------------------------------------------
def _mlp_fused_kernel(*refs, num_layers: int, compute_dtype):
    x_ref = refs[0]                                  # (tm, in_pad) compute_dtype
    w_refs = refs[1:1 + num_layers]                  # (din_pad_l, dout_pad_l)
    b_refs = refs[1 + num_layers:1 + 2 * num_layers]  # (1, dout_pad_l) f32
    o_ref = refs[1 + 2 * num_layers]                 # (tm, out_pad) f32

    act = x_ref[...]                                 # stays on-chip
    for l in range(num_layers):                      # static unroll
        h = jnp.dot(act, w_refs[l][...], preferred_element_type=jnp.float32)
        h = h + b_refs[l][...]                       # bias add in f32
        if l < num_layers - 1:
            act = jnp.maximum(h, 0.0).astype(compute_dtype)   # ReLU
        else:
            o_ref[...] = h.astype(o_ref.dtype)


# ----------------------------------------------------------------------------
# Fallback: per-layer K/N-tiled accumulating matmul (weights streamed per tile).
# Used when the resident-weight footprint would not fit v7x's 64 MiB VMEM.
# ----------------------------------------------------------------------------
def _linear_tiled_kernel(x_ref, w_ref, b_ref, o_ref, acc_ref, *, apply_relu):
    @pl.when(pl.program_id(2) == 0)
    def _():
        acc_ref[...] = jnp.zeros_like(acc_ref)

    acc_ref[...] += jnp.dot(x_ref[...], w_ref[...],
                            preferred_element_type=jnp.float32)

    @pl.when(pl.program_id(2) == pl.num_programs(2) - 1)
    def _():
        h = acc_ref[...] + b_ref[...]
        if apply_relu:
            h = jnp.maximum(h, 0.0)
        o_ref[...] = h.astype(o_ref.dtype)


def _linear_streamed(x, w, b, *, apply_relu, out_dtype, tm):
    M, K = x.shape
    _, N = w.shape
    tk = _pick_divisor_tile(K, 512)
    tn = _pick_divisor_tile(N, 256)
    grid = (M // tm, N // tn, K // tk)

    isz = jnp.dtype(x.dtype).itemsize
    osz = jnp.dtype(out_dtype).itemsize
    vmem_limit = int(2.0 * (2 * tm * tk * isz + 2 * tk * tn * isz
                            + 2 * tm * tn * osz + tm * tn * 4 + 2 * tn * 4)
                     ) + (4 << 20)
    vmem_limit = min(max(vmem_limit, 16 << 20), 100 << 20)

    kernel = functools.partial(_linear_tiled_kernel, apply_relu=apply_relu)
    return pl.pallas_call(
        kernel,
        out_shape=jax.ShapeDtypeStruct((M, N), out_dtype),
        grid_spec=pltpu.PrefetchScalarGridSpec(
            num_scalar_prefetch=0,
            grid=grid,
            in_specs=[
                pl.BlockSpec((tm, tk), lambda i, j, k: (i, k)),
                pl.BlockSpec((tk, tn), lambda i, j, k: (k, j)),
                pl.BlockSpec((1, tn), lambda i, j, k: (0, j)),
            ],
            out_specs=pl.BlockSpec((tm, tn), lambda i, j, k: (i, j)),
            scratch_shapes=[pltpu.VMEM((tm, tn), jnp.float32)],
        ),
        compiler_params=pltpu.CompilerParams(
            dimension_semantics=("parallel", "parallel", "arbitrary"),
            vmem_limit_bytes=vmem_limit,
        ),
    )(x, w, b)


# ----------------------------------------------------------------------------
# Parameter init / packing (one-time prep, outside the kernel)
# ----------------------------------------------------------------------------
def init_mlp_params(key, num_layers, in_dim, hidden_dim, out_dim):
    """PyTorch nn.Linear-style init; weights stored (out_dim, in_dim)."""
    dims = []
    d_in = in_dim
    for _ in range(num_layers - 1):
        dims.append((d_in, hidden_dim))
        d_in = hidden_dim
    dims.append((hidden_dim, out_dim))   # matches nn.Sequential construction

    params = []
    for (din, dout) in dims:
        key, kw, kb = jax.random.split(key, 3)
        bound = 1.0 / (din ** 0.5)
        w = jax.random.uniform(kw, (dout, din), jnp.float32, -bound, bound)
        b = jax.random.uniform(kb, (dout,), jnp.float32, -bound, bound)
        params.append((w, b))
    return params


def pack_mlp_params(params, compute_dtype=jnp.bfloat16):
    """Transpose each weight to (Din, Dout), zero-pad each dim to a multiple of
    128 (rectangular, per-layer) and keep biases padded in f32. Zero padding
    keeps the math exact (padded lanes stay 0 through bias add and ReLU)."""
    ws, bs, padded_dims = [], [], []
    for (w, b) in params:
        dout, din = w.shape
        din_p, dout_p = _round_up(din, 128), _round_up(dout, 128)
        w_p = jnp.zeros((din_p, dout_p), compute_dtype)
        w_p = w_p.at[:din, :dout].set(jnp.transpose(w).astype(compute_dtype))
        b_p = jnp.zeros((1, dout_p), jnp.float32)
        b_p = b_p.at[0, :dout].set(b.astype(jnp.float32))
        ws.append(w_p)
        bs.append(b_p)
        padded_dims.append((din_p, dout_p))
    return {
        "w": ws,
        "b": bs,
        "padded_dims": padded_dims,
        "in_dim": params[0][0].shape[1],
        "out_dim": params[-1][0].shape[0],
        "compute_dtype": compute_dtype,
    }


# ----------------------------------------------------------------------------
# Forward
# ----------------------------------------------------------------------------
def mlp_forward(packed, x, *, force_streamed=False):
    """Matches MLP.forward: (Linear + ReLU) * (num_layers - 1) + Linear."""
    B, in_dim = x.shape
    assert in_dim == packed["in_dim"]
    L = len(packed["w"])
    compute_dtype = packed["compute_dtype"]
    itemsize = jnp.dtype(compute_dtype).itemsize
    padded_dims = packed["padded_dims"]
    in_pad = padded_dims[0][0]
    out_pad = padded_dims[-1][1]

    tm, b_pad = _choose_batch_tiling(B)

    # Pad only to in_pad and cast to compute dtype in the same (materializing)
    # op — no d_pad-wide f32 input DMA.
    x_p = jnp.zeros((b_pad, in_pad), compute_dtype)
    x_p = x_p.at[:B, :in_dim].set(x.astype(jnp.float32).astype(compute_dtype))

    w_bytes = sum(dip * dop * itemsize for (dip, dop) in padded_dims)
    b_bytes = sum(dop * 4 for (_, dop) in padded_dims)

    if force_streamed or (w_bytes + b_bytes) > _RESIDENT_WEIGHT_BUDGET:
        # Weights too large to keep resident (v7x 64 MiB VMEM): stream them
        # through a K/N-tiled accumulating matmul, one pallas_call per layer.
        act = x_p
        for l in range(L):
            last = (l == L - 1)
            act = _linear_streamed(
                act, packed["w"][l], packed["b"][l],
                apply_relu=not last,
                out_dtype=jnp.float32 if last else compute_dtype,
                tm=tm)
        return act[:B, :packed["out_dim"]]

    # Resident-weight fused path.
    max_width = max(dop for (_, dop) in padded_dims)
    vmem_limit = int(1.25 * (
        w_bytes + b_bytes                      # single-buffered weights/biases
        + 2 * tm * in_pad * itemsize           # double-buffered input tile
        + 2 * tm * out_pad * 4                 # double-buffered output tile
        + 2 * tm * max_width * 4               # live f32 intermediates
    )) + (4 << 20)
    vmem_limit = min(max(vmem_limit, 16 << 20), 100 << 20)

    kernel = functools.partial(_mlp_fused_kernel, num_layers=L,
                               compute_dtype=compute_dtype)

    in_specs = [pl.BlockSpec((tm, in_pad), lambda i: (i, 0))]
    for (dip, dop) in padded_dims:          # weights: constant index, 1 buffer
        in_specs.append(pl.BlockSpec((dip, dop), lambda i: (0, 0),
                                     pipeline_mode=pl.Buffered(1)))
    for (_, dop) in padded_dims:            # biases: constant index, 1 buffer
        in_specs.append(pl.BlockSpec((1, dop), lambda i: (0, 0),
                                     pipeline_mode=pl.Buffered(1)))

    out_p = pl.pallas_call(
        kernel,
        out_shape=jax.ShapeDtypeStruct((b_pad, out_pad), jnp.float32),
        grid_spec=pltpu.PrefetchScalarGridSpec(
            num_scalar_prefetch=0,
            grid=(b_pad // tm,),
            in_specs=in_specs,
            out_specs=pl.BlockSpec((tm, out_pad), lambda i: (i, 0)),
        ),
        compiler_params=pltpu.CompilerParams(
            dimension_semantics=("parallel",),
            vmem_limit_bytes=vmem_limit,
        ),
    )(x_p, *packed["w"], *packed["b"])

    return out_p[:B, :packed["out_dim"]]


if __name__ == "__main__":
    # Small shapes consistent with the module's forward: x is (batch, in_dim).
    num_layers, in_dim, hidden_dim, out_dim = 3, 32, 64, 16
    batch = 8

    key = jax.random.PRNGKey(0)
    kx, kp = jax.random.split(key)
    x = jax.random.normal(kx, (batch, in_dim), jnp.float32)
    params = init_mlp_params(kp, num_layers, in_dim, hidden_dim, out_dim)

    packed = pack_mlp_params(params, compute_dtype=jnp.bfloat16)

    # Plain-JAX f32 reference of the same math.
    ref = x.astype(jnp.float32)
    for i, (w, b) in enumerate(params):
        ref = ref @ w.T + b
        if i < len(params) - 1:
            ref = jnp.maximum(ref, 0.0)

    # Fused resident-weight path.
    fwd = jax.jit(lambda xx: mlp_forward(packed, xx))
    out = fwd(x)
    jax.block_until_ready(out)
    assert out.shape == (batch, out_dim)
    # bf16 MXU inputs with f32 accumulation -> slightly looser tolerance.
    assert jnp.allclose(out, ref, atol=5e-2, rtol=5e-2), float(
        jnp.max(jnp.abs(out - ref)))

    # Also exercise the streamed (large-weight) fallback path on the same data.
    fwd_stream = jax.jit(lambda xx: mlp_forward(packed, xx, force_streamed=True))
    out_s = fwd_stream(x)
    jax.block_until_ready(out_s)
    assert jnp.allclose(out_s, ref, atol=5e-2, rtol=5e-2), float(
        jnp.max(jnp.abs(out_s - ref)))

    print("KERNEL_OK")
</pallas_src>

<mosaic_0001>
module attributes {stable_mosaic.version = 11 : i64} {
  func.func @_mlp_fused_kernel(%arg0: i32, %arg1: memref<16x128xbf16, #tpu.memory_space<vmem>>, %arg2: memref<128x128xbf16, #tpu.memory_space<vmem>>, %arg3: memref<128x128xbf16, #tpu.memory_space<vmem>>, %arg4: memref<128x128xbf16, #tpu.memory_space<vmem>>, %arg5: memref<1x128xf32, #tpu.memory_space<vmem>>, %arg6: memref<1x128xf32, #tpu.memory_space<vmem>>, %arg7: memref<1x128xf32, #tpu.memory_space<vmem>>, %arg8: memref<16x128xf32, #tpu.memory_space<vmem>>) attributes {dimension_semantics = [#tpu.dimension_semantics<parallel>], iteration_bounds = array<i64: 1>, scalar_prefetch = 0 : i64, scratch_operands = 0 : i64, tpu.core_type = #tpu.core_type<tc>, window_params = [{transform_indices = @transform_0, window_bounds = array<i64: 16, 128>}, {pipeline_mode = #tpu.pipeline_mode<synchronous>, transform_indices = @transform_1, window_bounds = array<i64: 128, 128>}, {pipeline_mode = #tpu.pipeline_mode<synchronous>, transform_indices = @transform_2, window_bounds = array<i64: 128, 128>}, {pipeline_mode = #tpu.pipeline_mode<synchronous>, transform_indices = @transform_3, window_bounds = array<i64: 128, 128>}, {pipeline_mode = #tpu.pipeline_mode<synchronous>, transform_indices = @transform_4, window_bounds = array<i64: 1, 128>}, {pipeline_mode = #tpu.pipeline_mode<synchronous>, transform_indices = @transform_5, window_bounds = array<i64: 1, 128>}, {pipeline_mode = #tpu.pipeline_mode<synchronous>, transform_indices = @transform_6, window_bounds = array<i64: 1, 128>}, {transform_indices = @transform_7, window_bounds = array<i64: 16, 128>}]} {
    %c0 = arith.constant 0 : index
    %c0_0 = arith.constant 0 : index
    %0 = vector.load %arg1[%c0, %c0_0] : memref<16x128xbf16, #tpu.memory_space<vmem>>, vector<16x128xbf16>
    %c0_1 = arith.constant 0 : index
    %c0_2 = arith.constant 0 : index
    %1 = vector.load %arg2[%c0_1, %c0_2] : memref<128x128xbf16, #tpu.memory_space<vmem>>, vector<128x128xbf16>
    %cst = arith.constant dense<0.000000e+00> : vector<16x128xf32>
    %2 = tpu.matmul %0, %1, %cst {dimension_numbers = #tpu.dot_dimension_numbers<[1], [0], [0], [1], [0, 0, 1, 1], [], []>} : vector<16x128xbf16>, vector<128x128xbf16>, vector<16x128xf32> -> vector<16x128xf32>
    %c0_3 = arith.constant 0 : index
    %c0_4 = arith.constant 0 : index
    %3 = vector.load %arg5[%c0_3, %c0_4] : memref<1x128xf32, #tpu.memory_space<vmem>>, vector<1x128xf32>
    %4 = vector.broadcast %3 : vector<1x128xf32> to vector<16x128xf32>
    %5 = arith.addf %2, %4 : vector<16x128xf32>
    %cst_5 = arith.constant 0.000000e+00 : f32
    %6 = vector.broadcast %cst_5 : f32 to vector<16x128xf32>
    %7 = arith.maximumf %5, %6 : vector<16x128xf32>
    %8 = arith.truncf %7 : vector<16x128xf32> to vector<16x128xbf16>
    %c0_6 = arith.constant 0 : index
    %c0_7 = arith.constant 0 : index
    %9 = vector.load %arg3[%c0_6, %c0_7] : memref<128x128xbf16, #tpu.memory_space<vmem>>, vector<128x128xbf16>
    %cst_8 = arith.constant dense<0.000000e+00> : vector<16x128xf32>
    %10 = tpu.matmul %8, %9, %cst_8 {dimension_numbers = #tpu.dot_dimension_numbers<[1], [0], [0], [1], [0, 0, 1, 1], [], []>} : vector<16x128xbf16>, vector<128x128xbf16>, vector<16x128xf32> -> vector<16x128xf32>
    %c0_9 = arith.constant 0 : index
    %c0_10 = arith.constant 0 : index
    %11 = vector.load %arg6[%c0_9, %c0_10] : memref<1x128xf32, #tpu.memory_space<vmem>>, vector<1x128xf32>
    %12 = vector.broadcast %11 : vector<1x128xf32> to vector<16x128xf32>
    %13 = arith.addf %10, %12 : vector<16x128xf32>
    %cst_11 = arith.constant 0.000000e+00 : f32
    %14 = vector.broadcast %cst_11 : f32 to vector<16x128xf32>
    %15 = arith.maximumf %13, %14 : vector<16x128xf32>
    %16 = arith.truncf %15 : vector<16x128xf32> to vector<16x128xbf16>
    %c0_12 = arith.constant 0 : index
    %c0_13 = arith.constant 0 : index
    %17 = vector.load %arg4[%c0_12, %c0_13] : memref<128x128xbf16, #tpu.memory_space<vmem>>, vector<128x128xbf16>
    %cst_14 = arith.constant dense<0.000000e+00> : vector<16x128xf32>
    %18 = tpu.matmul %16, %17, %cst_14 {dimension_numbers = #tpu.dot_dimension_numbers<[1], [0], [0], [1], [0, 0, 1, 1], [], []>} : vector<16x128xbf16>, vector<128x128xbf16>, vector<16x128xf32> -> vector<16x128xf32>
    %c0_15 = arith.constant 0 : index
    %c0_16 = arith.constant 0 : index
    %19 = vector.load %arg7[%c0_15, %c0_16] : memref<1x128xf32, #tpu.memory_space<vmem>>, vector<1x128xf32>
    %20 = vector.broadcast %19 : vector<1x128xf32> to vector<16x128xf32>
    %21 = arith.addf %18, %20 : vector<16x128xf32>
    %c0_17 = arith.constant 0 : index
    %c0_18 = arith.constant 0 : index
    %22 = vector.load %arg8[%c0_17, %c0_18] : memref<16x128xf32, #tpu.memory_space<vmem>>, vector<16x128xf32>
    tpu.vector_store %arg8[%c0_17, %c0_18], %21 {strides = array<i32>} : memref<16x128xf32, #tpu.memory_space<vmem>>, vector<16x128xf32>,
    return
  }
  func.func @transform_0(%arg0: i32) -> (i32, i32) {
    %c0_i32 = arith.constant 0 : i32
    %c0_i32_0 = arith.constant 0 : i32
    return %arg0, %c0_i32 : i32, i32
  }
  func.func @transform_1(%arg0: i32) -> (i32, i32) {
    %c0_i32 = arith.constant 0 : i32
    %c0_i32_0 = arith.constant 0 : i32
    %c0_i32_1 = arith.constant 0 : i32
    return %c0_i32, %c0_i32_0 : i32, i32
  }
  func.func @transform_2(%arg0: i32) -> (i32, i32) {
    %c0_i32 = arith.constant 0 : i32
    %c0_i32_0 = arith.constant 0 : i32
    %c0_i32_1 = arith.constant 0 : i32
    return %c0_i32, %c0_i32_0 : i32, i32
  }
  func.func @transform_3(%arg0: i32) -> (i32, i32) {
    %c0_i32 = arith.constant 0 : i32
    %c0_i32_0 = arith.constant 0 : i32
    %c0_i32_1 = arith.constant 0 : i32
    return %c0_i32, %c0_i32_0 : i32, i32
  }
  func.func @transform_4(%arg0: i32) -> (i32, i32) {
    %c0_i32 = arith.constant 0 : i32
    %c0_i32_0 = arith.constant 0 : i32
    %c0_i32_1 = arith.constant 0 : i32
    return %c0_i32, %c0_i32_0 : i32, i32
  }
  func.func @transform_5(%arg0: i32) -> (i32, i32) {
    %c0_i32 = arith.constant 0 : i32
    %c0_i32_0 = arith.constant 0 : i32
    %c0_i32_1 = arith.constant 0 : i32
    return %c0_i32, %c0_i32_0 : i32, i32
  }
  func.func @transform_6(%arg0: i32) -> (i32, i32) {
    %c0_i32 = arith.constant 0 : i32
    %c0_i32_0 = arith.constant 0 : i32
    %c0_i32_1 = arith.constant 0 : i32
    return %c0_i32, %c0_i32_0 : i32, i32
  }
  func.func @transform_7(%arg0: i32) -> (i32, i32) {
    %c0_i32 = arith.constant 0 : i32
    %c0_i32_0 = arith.constant 0 : i32
    return %arg0, %c0_i32 : i32, i32
  }
}

</mosaic_0001>

<llo_original>
// kernel: _lambda_.1
$region0: #{_lambda_.1}
  #allocation0 [shape = 'u32[]', space=smem, size = 0x4, offset = 0x4, fixed_abs, tag = 'smem constant byte address 0x4 - core index']
  #allocation1 [shape = 'u32[72,128]{1,0:T(1,128)}', space=vmem, size = 0x9000, scoped, tag = 'internal scratch']
  %s0 = inlined_call_operand.vmem [shape: bf16[16,128], index: 0, kind: input, shape index: {}]
  %s1 = inlined_call_operand.hbm [shape: bf16[128,128], index: 1, kind: input, shape index: {}]
  %s2 = inlined_call_operand.hbm [shape: bf16[128,128], index: 2, kind: input, shape index: {}]
  %s3 = inlined_call_operand.hbm [shape: bf16[128,128], index: 3, kind: input, shape index: {}]
  %s4 = inlined_call_operand.vmem [shape: f32[1,128], index: 4, kind: input, shape index: {}]
  %s5 = inlined_call_operand.vmem [shape: f32[1,128], index: 5, kind: input, shape index: {}]
  %s6 = inlined_call_operand.vmem [shape: f32[1,128], index: 6, kind: input, shape index: {}]
  %s7 = inlined_call_operand.vmem [shape: f32[16,128], index: 7, kind: output, shape index: {}]
  %s8 = sld [smem:[#allocation0]]
  $region50: #{_lambda_.1} parent=0
    _
  %s10 = ssub.s32 1, %s8
  %s11 = scalar_select 0, %s10, %s8
  $region1: #{_lambda_.1} parent=0
    #allocation2 [shape = 'u8[32768]{0}', space=vmem, size = 0x8000, scoped, tag = 'input window, operand 1, single buffered']
    #allocation3 [shape = 's32[1]{0}', space=sflag, size = 0x4, scoped, tag = 'scoped memory for _lambda_.1']
    #allocation4 [shape = 'u8[32768]{0}', space=vmem, size = 0x8000, scoped, tag = 'input window, operand 2, single buffered']
    #allocation5 [shape = 's32[1]{0}', space=sflag, size = 0x4, scoped, tag = 'scoped memory for _lambda_.1']
    #allocation6 [shape = 'u8[32768]{0}', space=vmem, size = 0x8000, scoped, tag = 'input window, operand 3, single buffered']
    %12 = vsyncpa [#allocation3], 0
    %13 = vsyncpa [#allocation5], 0
    // Predicated region
    $region2: #{_lambda_.1} parent=1 // pred_check
      _
    $region3: #{_lambda_.1} parent=1 // pred_check_branch
      %15 = sbr.rel (0) target = $region5
    $region4: #{_lambda_.1} parent=1 // pred_region
      _
    $region5: #{_lambda_.1} parent=1 // pred_fallthru
      _
    // Predicated region
    $region6: #{_lambda_.1} parent=1 // pred_check
      _
    $region7: #{_lambda_.1} parent=1 // pred_check_branch
      %17 = sbr.rel (0) target = $region9
    $region8: #{_lambda_.1} parent=1 // pred_region
      %19 = vsyncadd [#allocation3], 0
      %s20 = sshll.u32 %s1, 4
      %s21 = int_to_ptr.hbm [resolvable:$true] %s20
      %s22 = sshll.u32 [#allocation2], 4
      %s23 = int_to_ptr.vmem [resolvable:$true] %s22
      %28 = dma.hbm_to_vmem [thread:$0]  %s21, 1024, %s23, [#allocation3], 64, 64, 4
    $region9: #{_lambda_.1} parent=1 // pred_fallthru
      _
    // Predicated region
    $region10: #{_lambda_.1} parent=1 // pred_check
      _
    $region11: #{_lambda_.1} parent=1 // pred_check_branch
      %30 = sbr.rel (0) target = $region13
    $region12: #{_lambda_.1} parent=1 // pred_region
      %32 = vsyncadd [#allocation5], 0
      %s33 = sshll.u32 %s2, 4
      %s34 = int_to_ptr.hbm [resolvable:$true] %s33
      %s35 = sshll.u32 [#allocation4], 4
      %s36 = int_to_ptr.vmem [resolvable:$true] %s35
      %41 = dma.hbm_to_vmem [thread:$0]  %s34, 1024, %s36, [#allocation5], 64, 64, 4
    $region13: #{_lambda_.1} parent=1 // pred_fallthru
      _
    // Predicated region
    $region14: #{_lambda_.1} parent=1 // pred_check
      _
    $region15: #{_lambda_.1} parent=1 // pred_check_branch
      %43 = sbr.rel (0) target = $region17
    $region16: #{_lambda_.1} parent=1 // pred_region
      %45 = vsyncadd [#allocation5], 0
      %s46 = sshll.u32 %s3, 4
      %s47 = int_to_ptr.hbm [resolvable:$true] %s46
      %s48 = sshll.u32 [#allocation6], 4
      %s49 = int_to_ptr.vmem [resolvable:$true] %s48
      %54 = dma.hbm_to_vmem [thread:$0]  %s47, 1024, %s49, [#allocation5], 64, 64, 4
    $region17: #{_lambda_.1} parent=1 // pred_fallthru
      _
    // Predicated region
    $region18: #{_lambda_.1} parent=1 // pred_check
      _
    $region19: #{_lambda_.1} parent=1 // pred_check_branch
      %56 = sbr.rel (0) target = $region21
    $region20: #{_lambda_.1} parent=1 // pred_region
      _
    $region21: #{_lambda_.1} parent=1 // pred_fallthru
      _
    // Predicated region
    $region22: #{_lambda_.1} parent=1 // pred_check
      _
    $region23: #{_lambda_.1} parent=1 // pred_check_branch
      %58 = sbr.rel (0) target = $region25
    $region24: #{_lambda_.1} parent=1 // pred_region
      _
    $region25: #{_lambda_.1} parent=1 // pred_fallthru
      _
    // Predicated region
    $region26: #{_lambda_.1} parent=1 // pred_check
      _
    $region27: #{_lambda_.1} parent=1 // pred_check_branch
      %60 = sbr.rel (0) target = $region29
    $region28: #{_lambda_.1} parent=1 // pred_region
      _
    $region29: #{_lambda_.1} parent=1 // pred_fallthru
      _
    // Predicated region
    $region30: #{_lambda_.1} parent=1 // pred_check
      _
    $region31: #{_lambda_.1} parent=1 // pred_check_branch
      %62 = sbr.rel (0) target = $region33
    $region32: #{_lambda_.1} parent=1 // pred_region
      %64 = dma.done [#allocation3], 1024
    $region33: #{_lambda_.1} parent=1 // pred_fallthru
      _
    // Predicated region
    $region34: #{_lambda_.1} parent=1 // pred_check
      _
    $region35: #{_lambda_.1} parent=1 // pred_check_branch
      %66 = sbr.rel (0) target = $region37
    $region36: #{_lambda_.1} parent=1 // pred_region
      %68 = dma.done [#allocation5], 1024
    $region37: #{_lambda_.1} parent=1 // pred_fallthru
      _
    // Predicated region
    $region38: #{_lambda_.1} parent=1 // pred_check
      _
    $region39: #{_lambda_.1} parent=1 // pred_check_branch
      %70 = sbr.rel (0) target = $region41
    $region40: #{_lambda_.1} parent=1 // pred_region
      %72 = dma.done [#allocation5], 1024
    $region41: #{_lambda_.1} parent=1 // pred_fallthru
      _
    %v73 = vld [vmem:[%s0] sm:$0xf]
    %v74 = vld [vmem:[%s0 + $0x4] sm:$0xf]
    %v75 = vld [vmem:[#allocation2] sm:$0xf]
    %v76 = vld [vmem:[#allocation2 + $0x4] sm:$0xf]
    %v77 = vld [vmem:[#allocation2 + $0x8] sm:$0xf]
    %v78 = vld [vmem:[#allocation2 + $0xc] sm:$0xf]
    %v79 = vld [vmem:[#allocation2 + $0x10] sm:$0xf]
    %v80 = vld [vmem:[#allocation2 + $0x14] sm:$0xf]
    %v81 = vld [vmem:[#allocation2 + $0x18] sm:$0xf]
    %v82 = vld [vmem:[#allocation2 + $0x1c] sm:$0xf]
    %v83 = vld [vmem:[#allocation2 + $0x20] sm:$0xf]
    %v84 = vld [vmem:[#allocation2 + $0x24] sm:$0xf]
    %v85 = vld [vmem:[#allocation2 + $0x28] sm:$0xf]
    %v86 = vld [vmem:[#allocation2 + $0x2c] sm:$0xf]
    %v87 = vld [vmem:[#allocation2 + $0x30] sm:$0xf]
    %v88 = vld [vmem:[#allocation2 + $0x34] sm:$0xf]
    %v89 = vld [vmem:[#allocation2 + $0x38] sm:$0xf]
    %v90 = vld [vmem:[#allocation2 + $0x3c] sm:$0xf]
    %v91 = vld [vmem:[%s4] sm:$0x1]
    %v93 = vperm.slane %v91, 0
    %v97 = vunpack.c.l.b16 %v73
    %v98 = vunpack.c.l.b16 %v74
    %v99 = vpack.c.b16 %v98, %v97
    %v117 = vunpack.c.l.b16 %v75
    %v118 = vunpack.c.l.b16 %v76
    %v119 = vunpack.c.l.b16 %v77
    %v120 = vunpack.c.l.b16 %v78
    %v121 = vunpack.c.l.b16 %v79
    %v122 = vunpack.c.l.b16 %v80
    %v123 = vunpack.c.l.b16 %v81
    %v124 = vunpack.c.l.b16 %v82
    %v125 = vunpack.c.l.b16 %v83
    %v126 = vunpack.c.l.b16 %v84
    %v127 = vunpack.c.l.b16 %v85
    %v128 = vunpack.c.l.b16 %v86
    %v129 = vunpack.c.l.b16 %v87
    %v130 = vunpack.c.l.b16 %v88
    %v131 = vunpack.c.l.b16 %v89
    %v132 = vunpack.c.l.b16 %v90
    %v133 = vpack.c.b16 %v118, %v117
    %v134 = vpack.c.b16 %v120, %v119
    %v135 = vpack.c.b16 %v122, %v121
    %v136 = vpack.c.b16 %v124, %v123
    %v137 = vpack.c.b16 %v126, %v125
    %v138 = vpack.c.b16 %v128, %v127
    %v139 = vpack.c.b16 %v130, %v129
    %v140 = vpack.c.b16 %v132, %v131
    %149 = vmatpush.bf16.msra.mxu0 %v140
    %150 = vmatpush.bf16.msra.mxu0 %v139
    %151 = vmatpush.bf16.msra.mxu0 %v138
    %152 = vmatpush.bf16.msra.mxu0 %v137
    %153 = vmatpush.bf16.msra.mxu0 %v136
    %154 = vmatpush.bf16.msra.mxu0 %v135
    %155 = vmatpush.bf16.msra.mxu0 %v134
    %156 = vmatpush.bf16.msra.mxu0 %v133
    %157 = vmatmul.bf16.gmra.mxu0 %v99
    %v158 = vpop.f32.mrf.mxu0
    %v159 = vadd.f32 %v93, %v158
    %v160 = vpop.f32.mrf.mxu0
    %v161 = vadd.f32 %v93, %v160
    %162 = vdwg.mxu0
    %v163 = vmax.f32 %v159, 0.0
    %v164 = vmax.f32 %v161, 0.0
    %v165 = vpack.c.bf16 %v164, %v163
    %v166 = vld [vmem:[#allocation4] sm:$0xf]
    %v167 = vld [vmem:[#allocation4 + $0x4] sm:$0xf]
    %v168 = vld [vmem:[#allocation4 + $0x8] sm:$0xf]
    %v169 = vld [vmem:[#allocation4 + $0xc] sm:$0xf]
    %v170 = vld [vmem:[#allocation4 + $0x10] sm:$0xf]
    %v171 = vld [vmem:[#allocation4 + $0x14] sm:$0xf]
    %v172 = vld [vmem:[#allocation4 + $0x18] sm:$0xf]
    %v173 = vld [vmem:[#allocation4 + $0x1c] sm:$0xf]
    %v174 = vld [vmem:[#allocation4 + $0x20] sm:$0xf]
    %v175 = vld [vmem:[#allocation4 + $0x24] sm:$0xf]
    %v176 = vld [vmem:[#allocation4 + $0x28] sm:$0xf]
    %v177 = vld [vmem:[#allocation4 + $0x2c] sm:$0xf]
    %v178 = vld [vmem:[#allocation4 + $0x30] sm:$0xf]
    %v179 = vld [vmem:[#allocation4 + $0x34] sm:$0xf]
    %v180 = vld [vmem:[#allocation4 + $0x38] sm:$0xf]
    %v181 = vld [vmem:[#allocation4 + $0x3c] sm:$0xf]
    %v182 = vld [vmem:[%s5] sm:$0x1]
    %v184 = vperm.slane %v182, 0
    %v202 = vunpack.c.l.b16 %v166
    %v203 = vunpack.c.l.b16 %v167
    %v204 = vunpack.c.l.b16 %v168
    %v205 = vunpack.c.l.b16 %v169
    %v206 = vunpack.c.l.b16 %v170
    %v207 = vunpack.c.l.b16 %v171
    %v208 = vunpack.c.l.b16 %v172
    %v209 = vunpack.c.l.b16 %v173
    %v210 = vunpack.c.l.b16 %v174
    %v211 = vunpack.c.l.b16 %v175
    %v212 = vunpack.c.l.b16 %v176
    %v213 = vunpack.c.l.b16 %v177
    %v214 = vunpack.c.l.b16 %v178
    %v215 = vunpack.c.l.b16 %v179
    %v216 = vunpack.c.l.b16 %v180
    %v217 = vunpack.c.l.b16 %v181
    %v218 = vpack.c.b16 %v203, %v202
    %v219 = vpack.c.b16 %v205, %v204
    %v220 = vpack.c.b16 %v207, %v206
    %v221 = vpack.c.b16 %v209, %v208
    %v222 = vpack.c.b16 %v211, %v210
    %v223 = vpack.c.b16 %v213, %v212
    %v224 = vpack.c.b16 %v215, %v214
    %v225 = vpack.c.b16 %v217, %v216
    %234 = vmatpush.bf16.msra.mxu0 %v225
    %235 = vmatpush.bf16.msra.mxu0 %v224
    %236 = vmatpush.bf16.msra.mxu0 %v223
    %237 = vmatpush.bf16.msra.mxu0 %v222
    %238 = vmatpush.bf16.msra.mxu0 %v221
    %239 = vmatpush.bf16.msra.mxu0 %v220
    %240 = vmatpush.bf16.msra.mxu0 %v219
    %241 = vmatpush.bf16.msra.mxu0 %v218
    %242 = vmatmul.bf16.gmra.mxu0 %v165
    %v243 = vpop.f32.mrf.mxu0
    %v244 = vadd.f32 %v184, %v243
    %v245 = vpop.f32.mrf.mxu0
    %v246 = vadd.f32 %v184, %v245
    %247 = vdwg.mxu0
    %v248 = vmax.f32 %v244, 0.0
    %v249 = vmax.f32 %v246, 0.0
    %v250 = vpack.c.bf16 %v249, %v248
    %v251 = vld [vmem:[#allocation6] sm:$0xf]
    %v252 = vld [vmem:[#allocation6 + $0x4] sm:$0xf]
    %v253 = vld [vmem:[#allocation6 + $0x8] sm:$0xf]
    %v254 = vld [vmem:[#allocation6 + $0xc] sm:$0xf]
    %v255 = vld [vmem:[#allocation6 + $0x10] sm:$0xf]
    %v256 = vld [vmem:[#allocation6 + $0x14] sm:$0xf]
    %v257 = vld [vmem:[#allocation6 + $0x18] sm:$0xf]
    %v258 = vld [vmem:[#allocation6 + $0x1c] sm:$0xf]
    %v259 = vld [vmem:[#allocation6 + $0x20] sm:$0xf]
    %v260 = vld [vmem:[#allocation6 + $0x24] sm:$0xf]
    %v261 = vld [vmem:[#allocation6 + $0x28] sm:$0xf]
    %v262 = vld [vmem:[#allocation6 + $0x2c] sm:$0xf]
    %v263 = vld [vmem:[#allocation6 + $0x30] sm:$0xf]
    %v264 = vld [vmem:[#allocation6 + $0x34] sm:$0xf]
    %v265 = vld [vmem:[#allocation6 + $0x38] sm:$0xf]
    %v266 = vld [vmem:[#allocation6 + $0x3c] sm:$0xf]
    %v267 = vld [vmem:[%s6] sm:$0x1]
    %v269 = vperm.slane %v267, 0
    %v287 = vunpack.c.l.b16 %v251
    %v288 = vunpack.c.l.b16 %v252
    %v289 = vunpack.c.l.b16 %v253
    %v290 = vunpack.c.l.b16 %v254
    %v291 = vunpack.c.l.b16 %v255
    %v292 = vunpack.c.l.b16 %v256
    %v293 = vunpack.c.l.b16 %v257
    %v294 = vunpack.c.l.b16 %v258
    %v295 = vunpack.c.l.b16 %v259
    %v296 = vunpack.c.l.b16 %v260
    %v297 = vunpack.c.l.b16 %v261
    %v298 = vunpack.c.l.b16 %v262
    %v299 = vunpack.c.l.b16 %v263
    %v300 = vunpack.c.l.b16 %v264
    %v301 = vunpack.c.l.b16 %v265
    %v302 = vunpack.c.l.b16 %v266
    %v303 = vpack.c.b16 %v288, %v287
    %v304 = vpack.c.b16 %v290, %v289
    %v305 = vpack.c.b16 %v292, %v291
    %v306 = vpack.c.b16 %v294, %v293
    %v307 = vpack.c.b16 %v296, %v295
    %v308 = vpack.c.b16 %v298, %v297
    %v309 = vpack.c.b16 %v300, %v299
    %v310 = vpack.c.b16 %v302, %v301
    %319 = vmatpush.bf16.msra.mxu0 %v310
    %320 = vmatpush.bf16.msra.mxu0 %v309
    %321 = vmatpush.bf16.msra.mxu0 %v308
    %322 = vmatpush.bf16.msra.mxu0 %v307
    %323 = vmatpush.bf16.msra.mxu0 %v306
    %324 = vmatpush.bf16.msra.mxu0 %v305
    %325 = vmatpush.bf16.msra.mxu0 %v304
    %326 = vmatpush.bf16.msra.mxu0 %v303
    %327 = vmatmul.bf16.gmra.mxu0 %v250
    %v328 = vpop.f32.mrf.mxu0
    %v329 = vadd.f32 %v269, %v328
    %v330 = vpop.f32.mrf.mxu0
    %v331 = vadd.f32 %v269, %v330
    %332 = vdwg.mxu0
    %333 = vst [vmem:[%s7] sm:$0xff] %v329
    %334 = vst [vmem:[%s7 + $0x8] sm:$0xff] %v331
    // Predicated region
    $region42: #{_lambda_.1} parent=1 // pred_check
      _
    $region43: #{_lambda_.1} parent=1 // pred_check_branch
      %336 = sbr.rel (0) target = $region45
    $region44: #{_lambda_.1} parent=1 // pred_region
      _
    $region45: #{_lambda_.1} parent=1 // pred_fallthru
      _
    // Predicated region
    $region46: #{_lambda_.1} parent=1 // pred_check
      _
    $region47: #{_lambda_.1} parent=1 // pred_check_branch
      %338 = sbr.rel (0) target = $region49
    $region48: #{_lambda_.1} parent=1 // pred_region
      _
    $region49: #{_lambda_.1} parent=1 // pred_fallthru
      _
    %339 = vsyncpa [#allocation3], 1
    %340 = vsyncpa [#allocation5], 1

</llo_original>
